<compile_context>
chip_gen: v7x
topology: tpu7x:2x2x1
jax: 0.10.0
libtpu: 0.0.40
codegen_flags: <defaults>
</compile_context>

<pallas_src>
import functools

import numpy as np
import jax
import jax.numpy as jnp
from jax.experimental import pallas as pl
from jax.experimental.pallas import tpu as pltpu

POOL = 4  # nn.AvgPool2d(4)


def _round_up(x, m):
    return (x + m - 1) // m * m


# --------------------------------------------------------------------------- #
# Kernel
# --------------------------------------------------------------------------- #
def _lspa_kernel(org_ref, enh_ref, pa_ref, pb_ref, e_ref, m_acc, *, scale):
    # grid = (batch_blocks, k_blocks over the collapsed C*H axis)
    # org_ref / enh_ref : (bt, ch_tile, W) input-dtype blocks
    # pa_ref            : (Hp_pad, ch_tile) fused channel-sum + row-pool (1.0 entries)
    # pb_ref            : (W, Wp_pad) column-pool matrix, f32 (1.0 entries)
    # e_ref             : (bt, Hp_pad, Wp_pad) f32 output block (lane-dense)
    # m_acc             : (bt, Hp_pad, W) f32 scratch accumulator across k
    k = pl.program_id(1)
    last_k = k == pl.num_programs(1) - 1
    bt = org_ref.shape[0]
    hp_pad = e_ref.shape[1]
    wp_pad = e_ref.shape[2]

    @pl.when(k == 0)
    def _():
        m_acc[...] = jnp.zeros_like(m_acc)

    pa = pa_ref[...]

    @pl.loop(0, bt)  # dynamic loop bounds live ranges to one batch element
    def _(bb):
        # native-dtype subtract + matmul (bf16 stays bf16 on the MXU), f32 accumulate
        diff = org_ref[bb] - enh_ref[bb]                                   # (ch_tile, W)
        m_acc[bb] += jnp.dot(pa, diff, preferred_element_type=jnp.float32)  # (Hp_pad, W)

        @pl.when(last_k)
        def _():
            # column pool, then the single 1/(C*16) scale on the tiny pooled map
            d = jnp.dot(m_acc[bb], pb_ref[...],
                        preferred_element_type=jnp.float32) * scale        # (Hp_pad, Wp_pad)
            # Four directional neighbours via XLU rolls; the zero guard rows /
            # cols built into PA / PB supply the conv zero padding at the
            # border (hp_pad >= hp+1, wp_pad >= wp+1), so no masking is needed.
            sh_a = pltpu.roll(d, shift=1, axis=1)            # lane shift (+1)
            sh_b = pltpu.roll(d, shift=wp_pad - 1, axis=1)   # lane shift (-1)
            sh_c = pltpu.roll(d, shift=1, axis=0)            # sublane shift (+1)
            sh_d = pltpu.roll(d, shift=hp_pad - 1, axis=0)   # sublane shift (-1)
            e_ref[bb] = ((d - sh_a) ** 2 + (d - sh_b) ** 2 +
                         (d - sh_c) ** 2 + (d - sh_d) ** 2)


# --------------------------------------------------------------------------- #
# Host-side helpers
# --------------------------------------------------------------------------- #
def _make_pool_mats(c, h, w, hp_pad, wp_pad, in_dtype):
    """PA (Hp_pad, C*H) and PB (W, Wp_pad) pooling matrices with exact 1.0 entries.

    Rows >= Hp of PA and cols >= Wp of PB are exact zeros, so the pooled map's
    padding region is zero and rolls pull zeros across the image boundary.
    """
    hp, wp = h // POOL, w // POOL
    pa = np.zeros((hp_pad, c, h), np.float32)
    for i in range(hp):
        pa[i, :, POOL * i:POOL * i + POOL] = 1.0
    pa = pa.reshape(hp_pad, c * h)

    pb = np.zeros((w, wp_pad), np.float32)
    for j in range(wp):
        pb[POOL * j:POOL * j + POOL, j] = 1.0

    # PA matches the input dtype (1.0 is exact in bf16); PB multiplies the f32
    # accumulator, so keep it f32.
    return jnp.asarray(pa, dtype=in_dtype), jnp.asarray(pb, dtype=jnp.float32)


def _num_tensorcores():
    try:
        kind = jax.devices()[0].device_kind.lower()
    except Exception:
        return 1
    return 2 if ("v7" in kind or "7x" in kind) else 1


def _vmem_capacity_bytes():
    try:
        return int(pltpu.get_tpu_info().vmem_capacity_bytes)
    except Exception:
        return 64 << 20  # conservative fallback (v7x per-TC size)


def _pick_batch_tile(b, dbuf_bytes_per_elem, num_tc):
    """dbuf_bytes_per_elem: double-buffered VMEM bytes for BOTH inputs, one batch elem."""
    budget = (16 << 20) if num_tc == 1 else (8 << 20)
    bt = max(1, min(b, budget // max(dbuf_bytes_per_elem, 1)))
    if num_tc >= 2:
        # >= 2 grid steps per TensorCore so prefetch overlaps compute/writeback
        min_steps = 2 * num_tc
        if b >= min_steps:
            bt = min(bt, b // min_steps)
    while b % bt:  # exact divisor of b: never skip trailing batch elements
        bt -= 1
    return bt


def _pick_ch_tile(ch, w, itemsize, bt, input_budget):
    """K-tile of the collapsed C*H axis.

    Must divide C*H and (unless it is the full axis) be a multiple of 128 so
    the PA BlockSpec last dim stays tile-aligned.
    """
    w_eff = _round_up(w, 128)

    def blk_bytes(t):  # double-buffered blocks of BOTH inputs at this tile
        return 2 * 2 * bt * _round_up(t, 8) * w_eff * itemsize

    if ch < 256 or blk_bytes(ch) <= input_budget:
        return ch
    cands = [t for t in range(128, ch, 128) if ch % t == 0]
    if not cands:
        return ch
    fitting = [t for t in cands if blk_bytes(t) <= input_budget]
    return max(fitting) if fitting else min(cands)


# --------------------------------------------------------------------------- #
# Wrapper
# --------------------------------------------------------------------------- #
def l_spa(org, enhance, *, batch_tile=None):
    """Pallas implementation of L_spa.forward. Returns E of shape (B, 1, H/4, W/4)."""
    assert org.shape == enhance.shape
    b, c, h, w = org.shape
    assert h % POOL == 0 and w % POOL == 0

    hp, wp = h // POOL, w // POOL
    hp_pad = _round_up(hp + 1, 8)     # >= hp+1 guarantees a zero guard row
    wp_pad = _round_up(wp + 1, 128)   # >= wp+1 guarantees a zero guard col
    scale = 1.0 / (c * POOL * POOL)   # applied once inside the kernel (not baked in PA)

    ch = c * h
    itemsize = jnp.dtype(org.dtype).itemsize
    w_eff = _round_up(w, 128)

    num_tc = _num_tensorcores()
    vmem_cap = _vmem_capacity_bytes()
    vmem_ceiling = int(0.75 * vmem_cap)

    # Batch tile (generation-aware); a user-supplied value is fixed to a divisor of b.
    if batch_tile is not None:
        bt = max(1, min(int(batch_tile), b))
        while b % bt:
            bt -= 1
    else:
        bt = _pick_batch_tile(b, 2 * 2 * ch * w_eff * itemsize, num_tc)

    # Reduction tile over C*H (keeps per-step VMEM bounded on v7x, adds pipeline steps).
    ch_tile = _pick_ch_tile(ch, w, itemsize, bt,
                            input_budget=max(8 << 20, vmem_ceiling // 3))
    nk = ch // ch_tile

    pa, pb = _make_pool_mats(c, h, w, hp_pad, wp_pad, org.dtype)

    # Collapse (C, H): channel mean fuses into the row-pooling matmul; contiguous
    # collapse of adjacent dims, no HBM data movement.
    org_v = org.reshape(b, ch, w)
    enh_v = enhance.reshape(b, ch, w)

    # Honest VMEM budget: double-buffered inputs + PA/PB + output block
    # + accumulator scratch + live in-kernel temporaries + headroom.
    cht_eff = _round_up(ch_tile, 8)
    est = (2 * 2 * bt * cht_eff * w_eff * itemsize                 # input blocks (x2 bufs)
           + 2 * (hp_pad * cht_eff * itemsize + w * wp_pad * 4)    # PA / PB
           + 2 * bt * hp_pad * wp_pad * 4                          # output block
           + bt * hp_pad * w_eff * 4                               # m_acc scratch
           + cht_eff * w_eff * itemsize                            # live diff temp
           + hp_pad * w_eff * 4                                    # live matmul partial
           + 6 * hp_pad * wp_pad * 4                               # d / shifts / e temps
           + (2 << 20))                                            # headroom
    vmem_limit = int(min(max(est, 16 << 20), vmem_ceiling))

    kernel = functools.partial(_lspa_kernel, scale=scale)

    out = pl.pallas_call(
        kernel,
        out_shape=jax.ShapeDtypeStruct((b, hp_pad, wp_pad), jnp.float32),
        grid=(b // bt, nk),
        in_specs=[
            pl.BlockSpec((bt, ch_tile, w), lambda i, k: (i, k, 0)),   # org view
            pl.BlockSpec((bt, ch_tile, w), lambda i, k: (i, k, 0)),   # enhance view
            pl.BlockSpec((hp_pad, ch_tile), lambda i, k: (0, k)),     # PA (fused sum+row-pool)
            pl.BlockSpec((w, wp_pad), lambda i, k: (0, 0)),           # PB (col pool)
        ],
        out_specs=pl.BlockSpec((bt, hp_pad, wp_pad), lambda i, k: (i, 0, 0)),
        scratch_shapes=[pltpu.VMEM((bt, hp_pad, w), jnp.float32)],    # m accumulator
        compiler_params=pltpu.CompilerParams(
            dimension_semantics=("parallel", "arbitrary"),
            vmem_limit_bytes=vmem_limit),
    )(org_v, enh_v, pa, pb)

    # slice off the alignment padding; add the singleton channel dim
    return out[:, :hp, :wp][:, None, :, :]


# --------------------------------------------------------------------------- #
# Pure-JAX reference (PyTorch semantics) + self-test
# --------------------------------------------------------------------------- #
def _ref_l_spa(org, enh):
    om = jnp.mean(org.astype(jnp.float32), axis=1, keepdims=True)
    em = jnp.mean(enh.astype(jnp.float32), axis=1, keepdims=True)

    def pool(x):
        bb, _, hh, ww = x.shape
        return x.reshape(bb, 1, hh // POOL, POOL, ww // POOL, POOL).mean(axis=(3, 5))

    op, ep = pool(om), pool(em)

    def dirs(p):
        pad = jnp.pad(p, ((0, 0), (0, 0), (1, 1), (1, 1)))
        left = p - pad[:, :, 1:-1, 0:-2]
        right = p - pad[:, :, 1:-1, 2:]
        up = p - pad[:, :, 0:-2, 1:-1]
        down = p - pad[:, :, 2:, 1:-1]
        return left, right, up, down

    ol, orr, ou, od = dirs(op)
    el, er, eu, ed = dirs(ep)
    return (ol - el) ** 2 + (orr - er) ** 2 + (ou - eu) ** 2 + (od - ed) ** 2


if __name__ == "__main__":
    key = jax.random.PRNGKey(0)
    k1, k2 = jax.random.split(key)
    b, c, h, w = 2, 4, 16, 16
    org = jax.random.uniform(k1, (b, c, h, w), dtype=jnp.float32)
    enhance = jax.random.uniform(k2, (b, c, h, w), dtype=jnp.float32)

    out = l_spa(org, enhance)
    out = jax.block_until_ready(out)

    ref = _ref_l_spa(org, enhance)
    assert out.shape == (b, 1, h // POOL, w // POOL), out.shape
    np.testing.assert_allclose(np.asarray(out), np.asarray(ref),
                               rtol=1e-5, atol=1e-5)
    print("KERNEL_OK")
</pallas_src>

<mosaic_0001>
module attributes {stable_mosaic.version = 11 : i64} {
  func.func @_lspa_kernel(%arg0: i32, %arg1: i32, %arg2: memref<2x64x16xf32, #tpu.memory_space<vmem>>, %arg3: memref<2x64x16xf32, #tpu.memory_space<vmem>>, %arg4: memref<8x64xf32, #tpu.memory_space<vmem>>, %arg5: memref<16x128xf32, #tpu.memory_space<vmem>>, %arg6: memref<2x8x128xf32, #tpu.memory_space<vmem>>, %arg7: memref<2x8x16xf32, #tpu.memory_space<vmem>>) attributes {dimension_semantics = [#tpu.dimension_semantics<parallel>, #tpu.dimension_semantics<arbitrary>], iteration_bounds = array<i64: 1, 1>, scalar_prefetch = 0 : i64, scratch_operands = 1 : i64, tpu.core_type = #tpu.core_type<tc>, window_params = [{transform_indices = @transform_0, window_bounds = array<i64: 2, 64, 16>}, {transform_indices = @transform_1, window_bounds = array<i64: 2, 64, 16>}, {transform_indices = @transform_2, window_bounds = array<i64: 8, 64>}, {pipeline_mode = #tpu.pipeline_mode<synchronous>, transform_indices = @transform_3, window_bounds = array<i64: 16, 128>}, {transform_indices = @transform_4, window_bounds = array<i64: 2, 8, 128>}]} {
    %c0_i32 = arith.constant 0 : i32
    %0 = arith.cmpi eq, %arg1, %c0_i32 : i32
    %c0_i32_0 = arith.constant 0 : i32
    %1 = arith.cmpi eq, %arg1, %c0_i32_0 : i32
    %2 = arith.extui %1 : i1 to i32
    %c0_i32_1 = arith.constant 0 : i32
    %3 = arith.cmpi ne, %2, %c0_i32_1 : i32
    scf.if %3 {
      %cst = arith.constant 0.000000e+00 : f32
      %6 = vector.broadcast %cst : f32 to vector<2x8x16xf32>
      %c0_5 = arith.constant 0 : index
      %c0_6 = arith.constant 0 : index
      %c0_7 = arith.constant 0 : index
      %7 = vector.load %arg7[%c0_5, %c0_6, %c0_7] : memref<2x8x16xf32, #tpu.memory_space<vmem>>, vector<2x8x16xf32>
      tpu.vector_store %arg7[%c0_5, %c0_6, %c0_7], %6 {strides = array<i32>} : memref<2x8x16xf32, #tpu.memory_space<vmem>>, vector<2x8x16xf32>,
    } else {
    }
    %c0 = arith.constant 0 : index
    %c0_2 = arith.constant 0 : index
    %4 = vector.load %arg4[%c0, %c0_2] : memref<8x64xf32, #tpu.memory_space<vmem>>, vector<8x64xf32>
    %c0_i32_3 = arith.constant 0 : i32
    %c2_i32 = arith.constant 2 : i32
    %5 = arith.addi %c0_i32_3, %c2_i32 : i32
    %c1_i32 = arith.constant 1 : i32
    scf.for %arg8 = %c0_i32_3 to %5 step %c1_i32  : i32 {
      %c1_i32_5 = arith.constant 1 : i32
      %6 = arith.muli %arg8, %c1_i32_5 : i32
      %c0_i32_6 = arith.constant 0 : i32
      %7 = arith.addi %c0_i32_6, %6 : i32
      %8 = arith.index_cast %7 : i32 to index
      %c0_7 = arith.constant 0 : index
      %c0_8 = arith.constant 0 : index
      %9 = vector.load %arg2[%8, %c0_7, %c0_8] : memref<2x64x16xf32, #tpu.memory_space<vmem>>, vector<1x64x16xf32>
      %10 = vector.shape_cast %9 : vector<1x64x16xf32> to vector<64x16xf32>
      %11 = arith.index_cast %7 : i32 to index
      %c0_9 = arith.constant 0 : index
      %c0_10 = arith.constant 0 : index
      %12 = vector.load %arg3[%11, %c0_9, %c0_10] : memref<2x64x16xf32, #tpu.memory_space<vmem>>, vector<1x64x16xf32>
      %13 = vector.shape_cast %12 : vector<1x64x16xf32> to vector<64x16xf32>
      %14 = arith.subf %10, %13 : vector<64x16xf32>
      %15 = arith.index_cast %7 : i32 to index
      %c0_11 = arith.constant 0 : index
      %c0_12 = arith.constant 0 : index
      %16 = vector.load %arg7[%15, %c0_11, %c0_12] : memref<2x8x16xf32, #tpu.memory_space<vmem>>, vector<1x8x16xf32>
      %17 = vector.shape_cast %16 : vector<1x8x16xf32> to vector<8x16xf32>
      %cst = arith.constant dense<0.000000e+00> : vector<8x16xf32>
      %18 = tpu.matmul %4, %14, %cst {dimension_numbers = #tpu.dot_dimension_numbers<[1], [0], [0], [1], [0, 0, 1, 1], [], []>} : vector<8x64xf32>, vector<64x16xf32>, vector<8x16xf32> -> vector<8x16xf32>
      %19 = arith.addf %17, %18 : vector<8x16xf32>
      %20 = arith.index_cast %7 : i32 to index
      %c0_13 = arith.constant 0 : index
      %c0_14 = arith.constant 0 : index
      %21 = vector.load %arg7[%20, %c0_13, %c0_14] : memref<2x8x16xf32, #tpu.memory_space<vmem>>, vector<1x8x16xf32>
      %22 = vector.shape_cast %21 : vector<1x8x16xf32> to vector<8x16xf32>
      %23 = vector.shape_cast %19 : vector<8x16xf32> to vector<1x8x16xf32>
      tpu.vector_store %arg7[%20, %c0_13, %c0_14], %23 {strides = array<i32>} : memref<2x8x16xf32, #tpu.memory_space<vmem>>, vector<1x8x16xf32>,
      %24 = arith.extui %0 : i1 to i32
      %c0_i32_15 = arith.constant 0 : i32
      %25 = arith.cmpi ne, %24, %c0_i32_15 : i32
      scf.if %25 {
        %26 = arith.index_cast %7 : i32 to index
        %c0_16 = arith.constant 0 : index
        %c0_17 = arith.constant 0 : index
        %27 = vector.load %arg7[%26, %c0_16, %c0_17] : memref<2x8x16xf32, #tpu.memory_space<vmem>>, vector<1x8x16xf32>
        %28 = vector.shape_cast %27 : vector<1x8x16xf32> to vector<8x16xf32>
        %c0_18 = arith.constant 0 : index
        %c0_19 = arith.constant 0 : index
        %29 = vector.load %arg5[%c0_18, %c0_19] : memref<16x128xf32, #tpu.memory_space<vmem>>, vector<16x128xf32>
        %cst_20 = arith.constant dense<0.000000e+00> : vector<8x128xf32>
        %30 = tpu.matmul %28, %29, %cst_20 {dimension_numbers = #tpu.dot_dimension_numbers<[1], [0], [0], [1], [0, 0, 1, 1], [], []>} : vector<8x16xf32>, vector<16x128xf32>, vector<8x128xf32> -> vector<8x128xf32>
        %cst_21 = arith.constant 1.562500e-02 : f32
        %31 = vector.broadcast %cst_21 : f32 to vector<8x128xf32>
        %32 = arith.mulf %30, %31 : vector<8x128xf32>
        %c1_i32_22 = arith.constant 1 : i32
        %33 = tpu.dynamic_rotate %32 by %c1_i32_22 dim 1 : vector<8x128xf32>, i32 -> vector<8x128xf32>
        %c127_i32 = arith.constant 127 : i32
        %34 = tpu.dynamic_rotate %32 by %c127_i32 dim 1 : vector<8x128xf32>, i32 -> vector<8x128xf32>
        %c1_i32_23 = arith.constant 1 : i32
        %35 = tpu.dynamic_rotate %32 by %c1_i32_23 dim 0 : vector<8x128xf32>, i32 -> vector<8x128xf32>
        %c7_i32 = arith.constant 7 : i32
        %36 = tpu.dynamic_rotate %32 by %c7_i32 dim 0 : vector<8x128xf32>, i32 -> vector<8x128xf32>
        %37 = arith.subf %32, %33 : vector<8x128xf32>
        %38 = arith.mulf %37, %37 : vector<8x128xf32>
        %39 = arith.subf %32, %34 : vector<8x128xf32>
        %40 = arith.mulf %39, %39 : vector<8x128xf32>
        %41 = arith.addf %38, %40 : vector<8x128xf32>
        %42 = arith.subf %32, %35 : vector<8x128xf32>
        %43 = arith.mulf %42, %42 : vector<8x128xf32>
        %44 = arith.addf %41, %43 : vector<8x128xf32>
        %45 = arith.subf %32, %36 : vector<8x128xf32>
        %46 = arith.mulf %45, %45 : vector<8x128xf32>
        %47 = arith.addf %44, %46 : vector<8x128xf32>
        %48 = arith.index_cast %7 : i32 to index
        %c0_24 = arith.constant 0 : index
        %c0_25 = arith.constant 0 : index
        %49 = vector.load %arg6[%48, %c0_24, %c0_25] : memref<2x8x128xf32, #tpu.memory_space<vmem>>, vector<1x8x128xf32>
        %50 = vector.shape_cast %49 : vector<1x8x128xf32> to vector<8x128xf32>
        %51 = vector.shape_cast %47 : vector<8x128xf32> to vector<1x8x128xf32>
        tpu.vector_store %arg6[%48, %c0_24, %c0_25], %51 {strides = array<i32>} : memref<2x8x128xf32, #tpu.memory_space<vmem>>, vector<1x8x128xf32>,
      } else {
      }
    }
    %c2_i32_4 = arith.constant 2 : i32
    return
  }
  func.func @transform_0(%arg0: i32, %arg1: i32) -> (i32, i32, i32) {
    %c0_i32 = arith.constant 0 : i32
    %c0_i32_0 = arith.constant 0 : i32
    return %arg0, %arg1, %c0_i32 : i32, i32, i32
  }
  func.func @transform_1(%arg0: i32, %arg1: i32) -> (i32, i32, i32) {
    %c0_i32 = arith.constant 0 : i32
    %c0_i32_0 = arith.constant 0 : i32
    return %arg0, %arg1, %c0_i32 : i32, i32, i32
  }
  func.func @transform_2(%arg0: i32, %arg1: i32) -> (i32, i32) {
    %c0_i32 = arith.constant 0 : i32
    %c0_i32_0 = arith.constant 0 : i32
    return %c0_i32, %arg1 : i32, i32
  }
  func.func @transform_3(%arg0: i32, %arg1: i32) -> (i32, i32) {
    %c0_i32 = arith.constant 0 : i32
    %c0_i32_0 = arith.constant 0 : i32
    %c0_i32_1 = arith.constant 0 : i32
    return %c0_i32, %c0_i32_0 : i32, i32
  }
  func.func @transform_4(%arg0: i32, %arg1: i32) -> (i32, i32, i32) {
    %c0_i32 = arith.constant 0 : i32
    %c0_i32_0 = arith.constant 0 : i32
    %c0_i32_1 = arith.constant 0 : i32
    return %arg0, %c0_i32, %c0_i32_0 : i32, i32, i32
  }
}

</mosaic_0001>

<llo_original>
// kernel: tpu_custom_call.1
$region0: #{tpu_custom_call.1}
  #allocation0 [shape = 'u32[]', space=smem, size = 0x4, offset = 0x4, fixed_abs, tag = 'smem constant byte address 0x4 - core index']
  #allocation1 [shape = 'u32[144,128]{1,0:T(1,128)}', space=vmem, size = 0x12000, scoped, tag = 'internal scratch']
  #allocation2 [shape = 'f32[2,8,16]{2,1,0:T(8,128)}', space=vmem, size = 0x2000, scoped, tag = 'scratch operand']
  %s0 = inlined_call_operand.vmem [shape: f32[2,64,16], index: 0, kind: input, shape index: {}]
  %s1 = inlined_call_operand.vmem [shape: f32[2,64,16], index: 1, kind: input, shape index: {}]
  %s2 = inlined_call_operand.vmem [shape: f32[8,64], index: 2, kind: input, shape index: {}]
  %s3 = inlined_call_operand.vmem [shape: f32[16,128], index: 3, kind: input, shape index: {}]
  %s4 = inlined_call_operand.hbm [shape: f32[2,8,128], index: 4, kind: output, shape index: {}]
  %s5 = sld [smem:[#allocation0]]
  $region41: #{tpu_custom_call.1} parent=0
    _
  %s7 = ssub.s32 1, %s5
  %s8 = scalar_select 0, %s7, %s5
  $region1: #{tpu_custom_call.1} parent=0
    #allocation3 [shape = 'u8[8192]{0}', space=vmem, size = 0x2000, scoped, tag = 'output window, operand 0, single buffered']
    #allocation4 [shape = 's32[1]{0}', space=sflag, size = 0x4, scoped, tag = 'scoped memory for tpu_custom_call.1']
    %9 = vsyncpa [#allocation4], 0
    // Predicated region
    $region2: #{tpu_custom_call.1} parent=1 // pred_check
      _
    $region3: #{tpu_custom_call.1} parent=1 // pred_check_branch
      %11 = sbr.rel (0) target = $region5
    $region4: #{tpu_custom_call.1} parent=1 // pred_region
      _
    $region5: #{tpu_custom_call.1} parent=1 // pred_fallthru
      _
    // Predicated region
    $region6: #{tpu_custom_call.1} parent=1 // pred_check
      _
    $region7: #{tpu_custom_call.1} parent=1 // pred_check_branch
      %13 = sbr.rel (0) target = $region9
    $region8: #{tpu_custom_call.1} parent=1 // pred_region
      _
    $region9: #{tpu_custom_call.1} parent=1 // pred_fallthru
      _
    // Predicated region
    $region10: #{tpu_custom_call.1} parent=1 // pred_check
      _
    $region11: #{tpu_custom_call.1} parent=1 // pred_check_branch
      %15 = sbr.rel (0) target = $region13
    $region12: #{tpu_custom_call.1} parent=1 // pred_region
      _
    $region13: #{tpu_custom_call.1} parent=1 // pred_fallthru
      _
    // Predicated region
    $region14: #{tpu_custom_call.1} parent=1 // pred_check
      _
    $region15: #{tpu_custom_call.1} parent=1 // pred_check_branch
      %17 = sbr.rel (0) target = $region17
    $region16: #{tpu_custom_call.1} parent=1 // pred_region
      _
    $region17: #{tpu_custom_call.1} parent=1 // pred_fallthru
      _
    %p18 = scmp.eq.s32.totalorder 0, 0
    // Predicated region
    $region18: #{tpu_custom_call.1} parent=1 // pred_check
      %p19 = pneg %p18
    $region19: #{tpu_custom_call.1} parent=1 // pred_check_branch
      %21 = sbr.rel (%p19) target = $region21
    $region20: #{tpu_custom_call.1} parent=1 // pred_region
      %vm22 = vcmask 130048
      %23 = vst.msk [vmem:[#allocation2] sm:$0xff] %vm22, 0.0
      %24 = vst.msk [vmem:[#allocation2 + $0x8] sm:$0xff] %vm22, 0.0
    $region21: #{tpu_custom_call.1} parent=1 // pred_fallthru
      _
    %v25 = vld [vmem:[%s2] sm:$0xff]
    loop: start=0, step=1, limit=2
    $region22: #{tpu_custom_call.1} parent=1 // loop_pre_header
      _
    $region23: #{tpu_custom_call.1} parent=1 // loop_header
      %s27 = sphi 0, %s31
      %p28 = scmp.ge.s32.totalorder %s27, 2
    $region24: #{tpu_custom_call.1} parent=1 // loop_header_branch
      %30 = sbr.rel (%p28) target = $region28
    $region25: #{tpu_custom_call.1} parent=1 // loop_body
      %s32 = smul.u32 %s27, 64
      %s33 = scalar_lea.vmem %s0, %s32
      %v34 = vld [vmem:[%s33] sm:$0xff]
      %v35 = vld [vmem:[%s33 + $0x8] sm:$0xff]
      %v36 = vld [vmem:[%s33 + $0x10] sm:$0xff]
      %v37 = vld [vmem:[%s33 + $0x18] sm:$0xff]
      %v38 = vld [vmem:[%s33 + $0x20] sm:$0xff]
      %v39 = vld [vmem:[%s33 + $0x28] sm:$0xff]
      %v40 = vld [vmem:[%s33 + $0x30] sm:$0xff]
      %v41 = vld [vmem:[%s33 + $0x38] sm:$0xff]
      %s42 = scalar_lea.vmem %s1, %s32
      %v43 = vld [vmem:[%s42] sm:$0xff]
      %v44 = vld [vmem:[%s42 + $0x8] sm:$0xff]
      %v45 = vld [vmem:[%s42 + $0x10] sm:$0xff]
      %v46 = vld [vmem:[%s42 + $0x18] sm:$0xff]
      %v47 = vld [vmem:[%s42 + $0x20] sm:$0xff]
      %v48 = vld [vmem:[%s42 + $0x28] sm:$0xff]
      %v49 = vld [vmem:[%s42 + $0x30] sm:$0xff]
      %v50 = vld [vmem:[%s42 + $0x38] sm:$0xff]
      %v51 = vsub.f32 %v34, %v43
      %v52 = vsub.f32 %v35, %v44
      %v53 = vsub.f32 %v36, %v45
      %v54 = vsub.f32 %v37, %v46
      %v55 = vsub.f32 %v38, %v47
      %v56 = vsub.f32 %v39, %v48
      %v57 = vsub.f32 %v40, %v49
      %v58 = vsub.f32 %v41, %v50
      %s59 = smul.u32 %s27, 8
      %s60 = scalar_lea.vmem [#allocation2], %s59
      %v61 = vld [vmem:[%s60] sm:$0xff]
      %vm62 = vcmask 523264
      %v64 = vsel %vm62, %v25, 0
      %66 = vmatprep.subr.mxu0 0.0
      %67 = vmatpush1.msra.mxu0 %v51
      %68 = vmatprep.subr.mxu0 0.0
      %69 = vmatpush1.msra.mxu0 %v52
      %70 = vmatprep.subr.mxu0 0.0
      %71 = vmatpush1.msra.mxu0 %v53
      %72 = vmatprep.subr.mxu0 0.0
      %73 = vmatpush1.msra.mxu0 %v54
      %74 = vmatprep.subr.mxu0 0.0
      %75 = vmatpush1.msra.mxu0 %v55
      %76 = vmatprep.subr.mxu0 0.0
      %77 = vmatpush1.msra.mxu0 %v56
      %78 = vmatprep.subr.mxu0 0.0
      %79 = vmatpush1.msra.mxu0 %v57
      %80 = vmatprep.subr.mxu0 0.0
      %81 = vmatpush1.msra.mxu0 %v58
      %82 = vmatprep.subr.mxu0 0.0
      %83 = vmatpush1.msra.mxu0 0.0
      %84 = vmatprep.subr.mxu0 0.0
      %85 = vmatpush1.msra.mxu0 0.0
      %86 = vmatprep.subr.mxu0 0.0
      %87 = vmatpush1.msra.mxu0 0.0
      %88 = vmatprep.subr.mxu0 0.0
      %89 = vmatpush1.msra.mxu0 0.0
      %90 = vmatprep.subr.mxu0 0.0
      %91 = vmatpush1.msra.mxu0 0.0
      %92 = vmatprep.subr.mxu0 0.0
      %93 = vmatpush1.msra.mxu0 0.0
      %94 = vmatprep.subr.mxu0 0.0
      %95 = vmatpush1.msra.mxu0 0.0
      %96 = vmatprep.subr.mxu0 0.0
      %97 = vmatpush1.msra.mxu0 0.0
      %98 = vmatprep.subr.mxu0 0.0
      %99 = vmatpush1.msra.mxu0 0.0
      %100 = vmatprep.subr.mxu0 0.0
      %101 = vmatpush1.msra.mxu0 0.0
      %102 = vmatprep.subr.mxu0 0.0
      %103 = vmatpush1.msra.mxu0 0.0
      %104 = vmatprep.subr.mxu0 0.0
      %105 = vmatpush1.msra.mxu0 0.0
      %106 = vmatprep.subr.mxu0 0.0
      %107 = vmatpush1.msra.mxu0 0.0
      %108 = vmatprep.subr.mxu0 0.0
      %109 = vmatpush1.msra.mxu0 0.0
      %110 = vmatprep.subr.mxu0 0.0
      %111 = vmatpush1.msra.mxu0 0.0
      %112 = vmatprep.subr.mxu0 0.0
      %113 = vmatpush1.msra.mxu0 0.0
      %114 = vmatprep.subr.mxu0 0.0
      %115 = vmatpush1.msra.mxu0 0.0
      %116 = vmatprep.subr.mxu0 0.0
      %117 = vmatpush1.msra.mxu0 0.0
      %118 = vmatprep.subr.mxu0 0.0
      %119 = vmatpush1.msra.mxu0 0.0
      %120 = vmatprep.subr.mxu0 0.0
      %121 = vmatpush1.msra.mxu0 0.0
      %122 = vmatprep.subr.mxu0 0.0
      %123 = vmatpush1.msra.mxu0 0.0
      %124 = vmatprep.subr.mxu0 0.0
      %125 = vmatpush1.msra.mxu0 0.0
      %126 = vmatprep.subr.mxu0 0.0
      %127 = vmatpush1.msra.mxu0 0.0
      %128 = vmatprep.subr.mxu0 0.0
      %129 = vmatpush1.msra.mxu0 0.0
      %130 = vmatprep.mubr.f32.mxu0 0.0
      %131 = vmatmul.mubr.f32.gmra.mrb[0].mxu0 %v64
      %v132 = vpop.f32.mrb[0].mxu0
      %v133 = vadd.f32 0.0, %v132
      %v134 = vpop.f32.mrb[0].mxu0
      %135 = vdwg.mxu0
      %v136 = vadd.f32 %v61, %v133
      %vm137 = vcmask 130048
      %138 = vst.msk [vmem:[%s60] sm:$0xff] %vm137, %v136
      // Predicated region
      $region29: #{tpu_custom_call.1} parent=25 // pred_check
        %p139 = pneg %p18
      $region30: #{tpu_custom_call.1} parent=25 // pred_check_branch
        %141 = sbr.rel (%p139) target = $region32
      $region31: #{tpu_custom_call.1} parent=25 // pred_region
        %v142 = vld [vmem:[%s60] sm:$0xff]
        %v143 = vld [vmem:[%s3] sm:$0xff]
        %v144 = vld [vmem:[%s3 + $0x8] sm:$0xff]
        %v146 = vsel %vm137, %v142, 0
        %148 = vmatprep.subr.mxu0 0.0
        %149 = vmatpush1.msra.mxu0 %v143
        %150 = vmatprep.subr.mxu0 0.0
        %151 = vmatpush1.msra.mxu0 %v144
        %152 = vmatprep.subr.mxu0 0.0
        %153 = vmatpush1.msra.mxu0 0.0
        %154 = vmatprep.subr.mxu0 0.0
        %155 = vmatpush1.msra.mxu0 0.0
        %156 = vmatprep.subr.mxu0 0.0
        %157 = vmatpush1.msra.mxu0 0.0
        %158 = vmatprep.subr.mxu0 0.0
        %159 = vmatpush1.msra.mxu0 0.0
        %160 = vmatprep.subr.mxu0 0.0
        %161 = vmatpush1.msra.mxu0 0.0
        %162 = vmatprep.subr.mxu0 0.0
        %163 = vmatpush1.msra.mxu0 0.0
        %164 = vmatprep.subr.mxu0 0.0
        %165 = vmatpush1.msra.mxu0 0.0
        %166 = vmatprep.subr.mxu0 0.0
        %167 = vmatpush1.msra.mxu0 0.0
        %168 = vmatprep.subr.mxu0 0.0
        %169 = vmatpush1.msra.mxu0 0.0
        %170 = vmatprep.subr.mxu0 0.0
        %171 = vmatpush1.msra.mxu0 0.0
        %172 = vmatprep.subr.mxu0 0.0
        %173 = vmatpush1.msra.mxu0 0.0
        %174 = vmatprep.subr.mxu0 0.0
        %175 = vmatpush1.msra.mxu0 0.0
        %176 = vmatprep.subr.mxu0 0.0
        %177 = vmatpush1.msra.mxu0 0.0
        %178 = vmatprep.subr.mxu0 0.0
        %179 = vmatpush1.msra.mxu0 0.0
        %180 = vmatprep.subr.mxu0 0.0
        %181 = vmatpush1.msra.mxu0 0.0
        %182 = vmatprep.subr.mxu0 0.0
        %183 = vmatpush1.msra.mxu0 0.0
        %184 = vmatprep.subr.mxu0 0.0
        %185 = vmatpush1.msra.mxu0 0.0
        %186 = vmatprep.subr.mxu0 0.0
        %187 = vmatpush1.msra.mxu0 0.0
        %188 = vmatprep.subr.mxu0 0.0
        %189 = vmatpush1.msra.mxu0 0.0
        %190 = vmatprep.subr.mxu0 0.0
        %191 = vmatpush1.msra.mxu0 0.0
        %192 = vmatprep.subr.mxu0 0.0
        %193 = vmatpush1.msra.mxu0 0.0
        %194 = vmatprep.subr.mxu0 0.0
        %195 = vmatpush1.msra.mxu0 0.0
        %196 = vmatprep.subr.mxu0 0.0
        %197 = vmatpush1.msra.mxu0 0.0
        %198 = vmatprep.subr.mxu0 0.0
        %199 = vmatpush1.msra.mxu0 0.0
        %200 = vmatprep.subr.mxu0 0.0
        %201 = vmatpush1.msra.mxu0 0.0
        %202 = vmatprep.subr.mxu0 0.0
        %203 = vmatpush1.msra.mxu0 0.0
        %204 = vmatprep.subr.mxu0 0.0
        %205 = vmatpush1.msra.mxu0 0.0
        %206 = vmatprep.subr.mxu0 0.0
        %207 = vmatpush1.msra.mxu0 0.0
        %208 = vmatprep.subr.mxu0 0.0
        %209 = vmatpush1.msra.mxu0 0.0
        %210 = vmatprep.subr.mxu0 0.0
        %211 = vmatpush1.msra.mxu0 0.0
        %212 = vmatprep.mubr.f32.mxu0 0.0
        %213 = vmatmul.mubr.f32.gmra.mrb[0].mxu0 %v146
        %v214 = vpop.f32.mrb[0].mxu0
        %v215 = vadd.f32 0.0, %v214
        %v216 = vpop.f32.mrb[0].mxu0
        %217 = vdwg.mxu0
        %v218 = vmul.f32 %v215, 0.015625
        %219 = vrot.lane.b32.xlu0 %v218, 1
        %v220 = vpop.permute.xlu0 %219
        %221 = vrot.lane.b32.xlu0 %v218, 127
        %v222 = vpop.permute.xlu0 %221
        %v223 = vrot.slane %v218, 7
        %v224 = vrot.slane %v218, 1
        %v225 = vsub.f32 %v218, %v220
        %v226 = vmul.f32 %v225, %v225
        %v227 = vsub.f32 %v218, %v222
        %v228 = vmul.f32 %v227, %v227
        %v229 = vadd.f32 %v226, %v228
        %v230 = vsub.f32 %v218, %v223
        %v231 = vmul.f32 %v230, %v230
        %v232 = vadd.f32 %v229, %v231
        %v233 = vsub.f32 %v218, %v224
        %v234 = vmul.f32 %v233, %v233
        %v235 = vadd.f32 %v232, %v234
        %s236 = scalar_lea.vmem [#allocation3], %s59
        %237 = vst [vmem:[%s236] sm:$0xff] %v235
      $region32: #{tpu_custom_call.1} parent=25 // pred_fallthru
        _
    $region26: #{tpu_custom_call.1} parent=1 // loop_footer
      %s31 = sadd.s32 1, %s27
    $region27: #{tpu_custom_call.1} parent=1 // loop_footer_branch
      %26 = sbr.rel target = $region23
    $region28: #{tpu_custom_call.1} parent=1 // loop_exit
      _
    // Predicated region
    $region33: #{tpu_custom_call.1} parent=1 // pred_check
      _
    $region34: #{tpu_custom_call.1} parent=1 // pred_check_branch
      %239 = sbr.rel (0) target = $region36
    $region35: #{tpu_custom_call.1} parent=1 // pred_region
      %s241 = ssub.s32 256, 256
      %242 = vsyncadd [#allocation4], %s241
      %s243 = sshll.u32 [#allocation3], 4
      %s244 = int_to_ptr.vmem [resolvable:$true] %s243
      %249 = dma.vmem_to_hbm [thread:$0]  %s244, 256, %s4, [#allocation4], 128, 128, 8
    $region36: #{tpu_custom_call.1} parent=1 // pred_fallthru
      _
    // Predicated region
    $region37: #{tpu_custom_call.1} parent=1 // pred_check
      _
    $region38: #{tpu_custom_call.1} parent=1 // pred_check_branch
      %251 = sbr.rel (0) target = $region40
    $region39: #{tpu_custom_call.1} parent=1 // pred_region
      %252 = dma.done [#allocation4], 256
    $region40: #{tpu_custom_call.1} parent=1 // pred_fallthru
      _
    %253 = vsyncpa [#allocation4], 1

</llo_original>
